<compile_context>
chip_gen: v7x
topology: tpu7x:2x2x1
jax: 0.10.0
libtpu: 0.0.40
codegen_flags: <defaults>
</compile_context>

<pallas_src>
import jax
import jax.numpy as jnp
from jax import lax
from jax.experimental import pallas as pl
from jax.experimental.pallas import tpu as pltpu

LATENT_DIM = 100
NUM_CLASSES = 10
HIDDEN = 128
OUT_DIM = 784  # 1*28*28

# padded (MXU/lane-friendly) sizes for the *weights* only
LAT_PAD = 128  # K of the first matmul (zero cols in embed / zero rows in W1)
NC_PAD = 16    # padded class count for the one-hot embedding matmul


def _round_up(x, m):
    return ((x + m - 1) // m) * m


def _tpu_kind():
    try:
        return jax.devices()[0].device_kind.lower()
    except Exception:
        return ""


def _choose_tiling(batch):
    """Generation-aware batch tile (multiple of 8) and VMEM limit."""
    kind = _tpu_kind()
    b8 = _round_up(max(batch, 1), 8)

    is_v5 = "v5" in kind
    is_v6 = "v6" in kind
    two_cores = ("v7" in kind) or ("7x" in kind)  # v7x: 2 TensorCores/chip

    max_tb = 1024 if is_v5 else 2048
    tb = min(max_tb, b8)
    if two_cores and b8 >= 16:
        # keep >= 2 grid tiles so dimension_semantics=("parallel",) can shard
        # the batch axis across both TensorCores
        tb = min(tb, _round_up(pl.cdiv(b8, 2), 8))

    # v5e/v6e have 128 MiB physical VMEM; v7x (and unknown) get a tighter cap.
    vmem_limit = (64 << 20) if (is_v5 or is_v6) else (48 << 20)
    return tb, vmem_limit


def _generator_kernel(labels_ref, z_ref, embed_ref, w1_ref, b1_ref,
                      w2_ref, b2_ref, out_ref, x_ref):
    # labels_ref: (TB, 1) int32        z_ref : (TB, LATENT_DIM) f32
    # embed_ref : (NC_PAD, LAT_PAD)    w1_ref: (LAT_PAD, HIDDEN)   (bf16)
    # b1_ref    : (1, HIDDEN) f32      w2_ref: (HIDDEN, OUT_DIM)   (bf16)
    # b2_ref    : (1, OUT_DIM) f32     out_ref: (TB, OUT_DIM) f32
    # x_ref     : (TB, LAT_PAD) f32 VMEM scratch (zero-extended z * emb)
    tb = z_ref.shape[0]
    nc = embed_ref.shape[0]
    mx_dtype = embed_ref.dtype  # bf16 (MXU input dtype)

    labels = labels_ref[...]                                    # (TB, 1) int32
    class_iota = lax.broadcasted_iota(jnp.int32, (tb, nc), 1)   # (TB, NC_PAD)
    onehot = (class_iota == labels).astype(mx_dtype)            # exact 0/1

    # embedding lookup as one-hot matmul (MXU friendly), f32 accumulate
    emb = jnp.dot(onehot, embed_ref[...],
                  preferred_element_type=jnp.float32)           # (TB, LAT_PAD)

    # x = z * emb, zero-extended 100 -> 128 lanes entirely in VMEM
    # (z arrives with its native 100 lanes; no HBM lane-pad in the wrapper)
    x_ref[...] = jnp.zeros_like(x_ref)
    x_ref[:, :LATENT_DIM] = z_ref[...] * emb[:, :LATENT_DIM]    # f32 elementwise

    h = jnp.dot(x_ref[...].astype(mx_dtype), w1_ref[...],
                preferred_element_type=jnp.float32)             # (TB, HIDDEN)
    h = jnp.maximum(h + b1_ref[...], 0.0)                       # ReLU, f32

    o = jnp.dot(h.astype(mx_dtype), w2_ref[...],
                preferred_element_type=jnp.float32)             # (TB, OUT_DIM)
    out_ref[...] = jnp.tanh(o + b2_ref[...]).astype(out_ref.dtype)


def prepare_params(params, mxu_dtype=jnp.bfloat16):
    """One-time padding / casting of the weights (NOT per call)."""
    embed, w1, b1, w2, b2 = (params["embed"], params["w1"], params["b1"],
                             params["w2"], params["b2"])
    embed_p = jnp.zeros((NC_PAD, LAT_PAD), mxu_dtype)
    embed_p = embed_p.at[:NUM_CLASSES, :LATENT_DIM].set(embed.astype(mxu_dtype))
    w1_p = jnp.zeros((LAT_PAD, HIDDEN), mxu_dtype)
    w1_p = w1_p.at[:LATENT_DIM, :].set(w1.astype(mxu_dtype))
    b1_p = b1.astype(jnp.float32).reshape(1, HIDDEN)
    w2_p = w2.astype(mxu_dtype)                         # (HIDDEN, OUT_DIM)
    b2_p = b2.astype(jnp.float32).reshape(1, OUT_DIM)
    return {"embed_p": embed_p, "w1_p": w1_p, "b1_p": b1_p,
            "w2_p": w2_p, "b2_p": b2_p}


@jax.jit
def generator_forward(z, labels, prepared):
    """z: (B, LATENT_DIM) f32, labels: (B,) int -> (B, 1, 28, 28) f32."""
    embed_p = prepared["embed_p"]
    w1_p, b1_p = prepared["w1_p"], prepared["b1_p"]
    w2_p, b2_p = prepared["w2_p"], prepared["b2_p"]

    B = z.shape[0]
    TB, vmem_limit = _choose_tiling(B)
    B_pad = _round_up(B, TB)
    num_tiles = B_pad // TB

    # per-call glue: batch (row) padding only — no lane padding, no output slice
    z_p = jnp.pad(z.astype(jnp.float32), ((0, B_pad - B), (0, 0)))
    labels_p = jnp.pad(labels.astype(jnp.int32), (0, B_pad - B)).reshape(B_pad, 1)

    flops = 2 * B_pad * (NC_PAD * LAT_PAD + LAT_PAD * HIDDEN + HIDDEN * OUT_DIM)
    weight_bytes = ((embed_p.size + w1_p.size + w2_p.size) * 2
                    + (b1_p.size + b2_p.size) * 4)
    bytes_accessed = weight_bytes + B_pad * (LATENT_DIM * 4 + 4 + OUT_DIM * 4)

    out_p = pl.pallas_call(
        _generator_kernel,
        out_shape=jax.ShapeDtypeStruct((B_pad, OUT_DIM), jnp.float32),
        grid_spec=pltpu.PrefetchScalarGridSpec(
            num_scalar_prefetch=0,
            grid=(num_tiles,),
            in_specs=[
                pl.BlockSpec((TB, 1), lambda i: (i, 0)),             # labels
                pl.BlockSpec((TB, LATENT_DIM), lambda i: (i, 0)),    # z (100 lanes, full dim)
                pl.BlockSpec((NC_PAD, LAT_PAD), lambda i: (0, 0)),   # embedding
                pl.BlockSpec((LAT_PAD, HIDDEN), lambda i: (0, 0)),   # W1
                pl.BlockSpec((1, HIDDEN), lambda i: (0, 0)),         # b1
                pl.BlockSpec((HIDDEN, OUT_DIM), lambda i: (0, 0)),   # W2
                pl.BlockSpec((1, OUT_DIM), lambda i: (0, 0)),        # b2
            ],
            out_specs=pl.BlockSpec((TB, OUT_DIM), lambda i: (i, 0)), # 784-wide direct
            scratch_shapes=[pltpu.VMEM((TB, LAT_PAD), jnp.float32)],
        ),
        compiler_params=pltpu.CompilerParams(
            dimension_semantics=("parallel",),
            vmem_limit_bytes=vmem_limit),
        cost_estimate=pl.CostEstimate(
            flops=flops,
            transcendentals=B_pad * OUT_DIM,
            bytes_accessed=bytes_accessed),
    )(labels_p, z_p, embed_p, w1_p, b1_p, w2_p, b2_p)

    # keep the [:B] row slice: padded batch rows hold tanh(relu(b1)@W2 + b2)
    return out_p[:B].reshape(B, 1, 28, 28)


def init_params(key):
    k0, k1, k2, k3, k4 = jax.random.split(key, 5)
    # deterministic synthetic parameters (shapes match the PyTorch module)
    embed = jax.random.normal(k0, (NUM_CLASSES, LATENT_DIM), jnp.float32)
    w1 = jax.random.normal(k1, (LATENT_DIM, HIDDEN), jnp.float32) * 0.05
    b1 = jax.random.normal(k2, (HIDDEN,), jnp.float32) * 0.01
    w2 = jax.random.normal(k3, (HIDDEN, OUT_DIM), jnp.float32) * 0.05
    b2 = jax.random.normal(k4, (OUT_DIM,), jnp.float32) * 0.01
    return {"embed": embed, "w1": w1, "b1": b1, "w2": w2, "b2": b2}


def reference_forward(z, labels, params):
    emb = params["embed"][labels]                  # (B, LATENT_DIM)
    x = z * emb
    h = jnp.maximum(x @ params["w1"] + params["b1"], 0.0)
    o = jnp.tanh(h @ params["w2"] + params["b2"])
    return o.reshape(-1, 1, 28, 28)


if __name__ == "__main__":
    key = jax.random.PRNGKey(0)
    kp, kz, kl = jax.random.split(key, 3)

    B = 4
    params = init_params(kp)
    prepared = prepare_params(params)              # one-time pad + bf16 cast
    z = jax.random.normal(kz, (B, LATENT_DIM), jnp.float32)
    labels = jax.random.randint(kl, (B,), 0, NUM_CLASSES, jnp.int32)

    out = generator_forward(z, labels, prepared)
    out = jax.block_until_ready(out)

    ref = reference_forward(z, labels, params)
    assert out.shape == (B, 1, 28, 28), out.shape
    # bf16 MXU inputs -> loosen tolerance vs the pure-f32 reference
    # (NOTE: outputs are not f32-bit-exact vs PyTorch; differences are ~1e-2)
    assert jnp.allclose(out, ref, atol=2e-2, rtol=2e-2), "mismatch vs reference"

    print("KERNEL_OK")
</pallas_src>

<mosaic_0001>
module attributes {stable_mosaic.version = 11 : i64} {
  func.func @_generator_kernel(%arg0: i32, %arg1: memref<8x1xi32, #tpu.memory_space<vmem>>, %arg2: memref<8x100xf32, #tpu.memory_space<vmem>>, %arg3: memref<16x128xbf16, #tpu.memory_space<vmem>>, %arg4: memref<128x128xbf16, #tpu.memory_space<vmem>>, %arg5: memref<1x128xf32, #tpu.memory_space<vmem>>, %arg6: memref<128x784xbf16, #tpu.memory_space<vmem>>, %arg7: memref<1x784xf32, #tpu.memory_space<vmem>>, %arg8: memref<8x784xf32, #tpu.memory_space<vmem>>, %arg9: memref<8x128xf32, #tpu.memory_space<vmem>>) attributes {dimension_semantics = [#tpu.dimension_semantics<parallel>], iteration_bounds = array<i64: 1>, scalar_prefetch = 0 : i64, scratch_operands = 1 : i64, tpu.core_type = #tpu.core_type<tc>, window_params = [{transform_indices = @transform_0, window_bounds = array<i64: 8, 1>}, {transform_indices = @transform_1, window_bounds = array<i64: 8, 100>}, {pipeline_mode = #tpu.pipeline_mode<synchronous>, transform_indices = @transform_2, window_bounds = array<i64: 16, 128>}, {pipeline_mode = #tpu.pipeline_mode<synchronous>, transform_indices = @transform_3, window_bounds = array<i64: 128, 128>}, {pipeline_mode = #tpu.pipeline_mode<synchronous>, transform_indices = @transform_4, window_bounds = array<i64: 1, 128>}, {pipeline_mode = #tpu.pipeline_mode<synchronous>, transform_indices = @transform_5, window_bounds = array<i64: 128, 784>}, {pipeline_mode = #tpu.pipeline_mode<synchronous>, transform_indices = @transform_6, window_bounds = array<i64: 1, 784>}, {transform_indices = @transform_7, window_bounds = array<i64: 8, 784>}]} {
    %c0 = arith.constant 0 : index
    %c0_0 = arith.constant 0 : index
    %0 = vector.load %arg1[%c0, %c0_0] : memref<8x1xi32, #tpu.memory_space<vmem>>, vector<8x1xi32>
    %1 = tpu.iota {dimensions = array<i32: 1>} : vector<8x16xi32>
    %2 = vector.broadcast %0 : vector<8x1xi32> to vector<8x16xi32>
    %3 = arith.cmpi eq, %1, %2 : vector<8x16xi32>
    %4 = arith.extui %3 : vector<8x16xi1> to vector<8x16xi32>
    %5 = arith.sitofp %4 : vector<8x16xi32> to vector<8x16xf32>
    %6 = arith.truncf %5 : vector<8x16xf32> to vector<8x16xbf16>
    %c0_1 = arith.constant 0 : index
    %c0_2 = arith.constant 0 : index
    %7 = vector.load %arg3[%c0_1, %c0_2] : memref<16x128xbf16, #tpu.memory_space<vmem>>, vector<16x128xbf16>
    %cst = arith.constant dense<0.000000e+00> : vector<8x128xf32>
    %8 = tpu.matmul %6, %7, %cst {dimension_numbers = #tpu.dot_dimension_numbers<[1], [0], [0], [1], [0, 0, 1, 1], [], []>} : vector<8x16xbf16>, vector<16x128xbf16>, vector<8x128xf32> -> vector<8x128xf32>
    %cst_3 = arith.constant 0.000000e+00 : f32
    %9 = vector.broadcast %cst_3 : f32 to vector<8x128xf32>
    %c0_4 = arith.constant 0 : index
    %c0_5 = arith.constant 0 : index
    %10 = vector.load %arg9[%c0_4, %c0_5] : memref<8x128xf32, #tpu.memory_space<vmem>>, vector<8x128xf32>
    tpu.vector_store %arg9[%c0_4, %c0_5], %9 {strides = array<i32>} : memref<8x128xf32, #tpu.memory_space<vmem>>, vector<8x128xf32>,
    %c0_6 = arith.constant 0 : index
    %c0_7 = arith.constant 0 : index
    %11 = vector.load %arg2[%c0_6, %c0_7] : memref<8x100xf32, #tpu.memory_space<vmem>>, vector<8x100xf32>
    %12 = vector.extract_strided_slice %8 {offsets = [0, 0], sizes = [8, 100], strides = [1, 1]} : vector<8x128xf32> to vector<8x100xf32>
    %13 = arith.mulf %11, %12 : vector<8x100xf32>
    %c0_8 = arith.constant 0 : index
    %c0_9 = arith.constant 0 : index
    %14 = vector.load %arg9[%c0_8, %c0_9] : memref<8x128xf32, #tpu.memory_space<vmem>>, vector<8x100xf32>
    tpu.vector_store %arg9[%c0_8, %c0_9], %13 {strides = array<i32>} : memref<8x128xf32, #tpu.memory_space<vmem>>, vector<8x100xf32>,
    %c0_10 = arith.constant 0 : index
    %c0_11 = arith.constant 0 : index
    %15 = vector.load %arg9[%c0_10, %c0_11] : memref<8x128xf32, #tpu.memory_space<vmem>>, vector<8x128xf32>
    %16 = arith.truncf %15 : vector<8x128xf32> to vector<8x128xbf16>
    %c0_12 = arith.constant 0 : index
    %c0_13 = arith.constant 0 : index
    %17 = vector.load %arg4[%c0_12, %c0_13] : memref<128x128xbf16, #tpu.memory_space<vmem>>, vector<128x128xbf16>
    %cst_14 = arith.constant dense<0.000000e+00> : vector<8x128xf32>
    %18 = tpu.matmul %16, %17, %cst_14 {dimension_numbers = #tpu.dot_dimension_numbers<[1], [0], [0], [1], [0, 0, 1, 1], [], []>} : vector<8x128xbf16>, vector<128x128xbf16>, vector<8x128xf32> -> vector<8x128xf32>
    %c0_15 = arith.constant 0 : index
    %c0_16 = arith.constant 0 : index
    %19 = vector.load %arg5[%c0_15, %c0_16] : memref<1x128xf32, #tpu.memory_space<vmem>>, vector<1x128xf32>
    %20 = vector.broadcast %19 : vector<1x128xf32> to vector<8x128xf32>
    %21 = arith.addf %18, %20 : vector<8x128xf32>
    %cst_17 = arith.constant 0.000000e+00 : f32
    %22 = vector.broadcast %cst_17 : f32 to vector<8x128xf32>
    %23 = arith.maximumf %21, %22 : vector<8x128xf32>
    %24 = arith.truncf %23 : vector<8x128xf32> to vector<8x128xbf16>
    %c0_18 = arith.constant 0 : index
    %c0_19 = arith.constant 0 : index
    %25 = vector.load %arg6[%c0_18, %c0_19] : memref<128x784xbf16, #tpu.memory_space<vmem>>, vector<128x784xbf16>
    %cst_20 = arith.constant dense<0.000000e+00> : vector<8x784xf32>
    %26 = tpu.matmul %24, %25, %cst_20 {dimension_numbers = #tpu.dot_dimension_numbers<[1], [0], [0], [1], [0, 0, 1, 1], [], []>} : vector<8x128xbf16>, vector<128x784xbf16>, vector<8x784xf32> -> vector<8x784xf32>
    %c0_21 = arith.constant 0 : index
    %c0_22 = arith.constant 0 : index
    %27 = vector.load %arg7[%c0_21, %c0_22] : memref<1x784xf32, #tpu.memory_space<vmem>>, vector<1x784xf32>
    %28 = vector.broadcast %27 : vector<1x784xf32> to vector<8x784xf32>
    %29 = arith.addf %26, %28 : vector<8x784xf32>
    %30 = math.tanh %29 : vector<8x784xf32>
    %c0_23 = arith.constant 0 : index
    %c0_24 = arith.constant 0 : index
    %31 = vector.load %arg8[%c0_23, %c0_24] : memref<8x784xf32, #tpu.memory_space<vmem>>, vector<8x784xf32>
    tpu.vector_store %arg8[%c0_23, %c0_24], %30 {strides = array<i32>} : memref<8x784xf32, #tpu.memory_space<vmem>>, vector<8x784xf32>,
    return
  }
  func.func @transform_0(%arg0: i32) -> (i32, i32) {
    %c0_i32 = arith.constant 0 : i32
    %c0_i32_0 = arith.constant 0 : i32
    return %arg0, %c0_i32 : i32, i32
  }
  func.func @transform_1(%arg0: i32) -> (i32, i32) {
    %c0_i32 = arith.constant 0 : i32
    %c0_i32_0 = arith.constant 0 : i32
    return %arg0, %c0_i32 : i32, i32
  }
  func.func @transform_2(%arg0: i32) -> (i32, i32) {
    %c0_i32 = arith.constant 0 : i32
    %c0_i32_0 = arith.constant 0 : i32
    %c0_i32_1 = arith.constant 0 : i32
    return %c0_i32, %c0_i32_0 : i32, i32
  }
  func.func @transform_3(%arg0: i32) -> (i32, i32) {
    %c0_i32 = arith.constant 0 : i32
    %c0_i32_0 = arith.constant 0 : i32
    %c0_i32_1 = arith.constant 0 : i32
    return %c0_i32, %c0_i32_0 : i32, i32
  }
  func.func @transform_4(%arg0: i32) -> (i32, i32) {
    %c0_i32 = arith.constant 0 : i32
    %c0_i32_0 = arith.constant 0 : i32
    %c0_i32_1 = arith.constant 0 : i32
    return %c0_i32, %c0_i32_0 : i32, i32
  }
  func.func @transform_5(%arg0: i32) -> (i32, i32) {
    %c0_i32 = arith.constant 0 : i32
    %c0_i32_0 = arith.constant 0 : i32
    %c0_i32_1 = arith.constant 0 : i32
    return %c0_i32, %c0_i32_0 : i32, i32
  }
  func.func @transform_6(%arg0: i32) -> (i32, i32) {
    %c0_i32 = arith.constant 0 : i32
    %c0_i32_0 = arith.constant 0 : i32
    %c0_i32_1 = arith.constant 0 : i32
    return %c0_i32, %c0_i32_0 : i32, i32
  }
  func.func @transform_7(%arg0: i32) -> (i32, i32) {
    %c0_i32 = arith.constant 0 : i32
    %c0_i32_0 = arith.constant 0 : i32
    return %arg0, %c0_i32 : i32, i32
  }
}

</mosaic_0001>

<llo_original>
// kernel: generator_forward.1
$region0: #{generator_forward.1}
  #allocation0 [shape = 'u32[]', space=smem, size = 0x4, offset = 0x4, fixed_abs, tag = 'smem constant byte address 0x4 - core index']
  #allocation1 [shape = 'u32[144,128]{1,0:T(1,128)}', space=vmem, size = 0x12000, scoped, tag = 'internal scratch']
  #allocation2 [shape = 'f32[8,128]{1,0:T(8,128)}', space=vmem, size = 0x1000, scoped, tag = 'scratch operand']
  %s0 = inlined_call_operand.vmem [shape: s32[8,1], index: 0, kind: input, shape index: {}]
  %s1 = inlined_call_operand.vmem [shape: f32[8,100], index: 1, kind: input, shape index: {}]
  %s2 = inlined_call_operand.vmem [shape: bf16[16,128], index: 2, kind: input, shape index: {}]
  %s3 = inlined_call_operand.vmem [shape: bf16[128,128], index: 3, kind: input, shape index: {}]
  %s4 = inlined_call_operand.vmem [shape: f32[1,128], index: 4, kind: input, shape index: {}]
  %s5 = inlined_call_operand.vmem [shape: bf16[128,784], index: 5, kind: input, shape index: {}]
  %s6 = inlined_call_operand.vmem [shape: f32[1,784], index: 6, kind: input, shape index: {}]
  %s7 = inlined_call_operand.vmem [shape: f32[8,784], index: 7, kind: output, shape index: {}]
  %s8 = sld [smem:[#allocation0]]
  $region38: #{generator_forward.1} parent=0
    _
  %s10 = ssub.s32 1, %s8
  %s11 = scalar_select 0, %s10, %s8
  // Predicated region
  $region2: #{generator_forward.1} parent=0 // pred_check
    _
  $region3: #{generator_forward.1} parent=0 // pred_check_branch
    %13 = sbr.rel (0) target = $region5
  $region4: #{generator_forward.1} parent=0 // pred_region
    _
  $region5: #{generator_forward.1} parent=0 // pred_fallthru
    _
  // Predicated region
  $region6: #{generator_forward.1} parent=0 // pred_check
    _
  $region7: #{generator_forward.1} parent=0 // pred_check_branch
    %15 = sbr.rel (0) target = $region9
  $region8: #{generator_forward.1} parent=0 // pred_region
    _
  $region9: #{generator_forward.1} parent=0 // pred_fallthru
    _
  // Predicated region
  $region10: #{generator_forward.1} parent=0 // pred_check
    _
  $region11: #{generator_forward.1} parent=0 // pred_check_branch
    %17 = sbr.rel (0) target = $region13
  $region12: #{generator_forward.1} parent=0 // pred_region
    _
  $region13: #{generator_forward.1} parent=0 // pred_fallthru
    _
  // Predicated region
  $region14: #{generator_forward.1} parent=0 // pred_check
    _
  $region15: #{generator_forward.1} parent=0 // pred_check_branch
    %19 = sbr.rel (0) target = $region17
  $region16: #{generator_forward.1} parent=0 // pred_region
    _
  $region17: #{generator_forward.1} parent=0 // pred_fallthru
    _
  // Predicated region
  $region18: #{generator_forward.1} parent=0 // pred_check
    _
  $region19: #{generator_forward.1} parent=0 // pred_check_branch
    %21 = sbr.rel (0) target = $region21
  $region20: #{generator_forward.1} parent=0 // pred_region
    _
  $region21: #{generator_forward.1} parent=0 // pred_fallthru
    _
  // Predicated region
  $region22: #{generator_forward.1} parent=0 // pred_check
    _
  $region23: #{generator_forward.1} parent=0 // pred_check_branch
    %23 = sbr.rel (0) target = $region25
  $region24: #{generator_forward.1} parent=0 // pred_region
    _
  $region25: #{generator_forward.1} parent=0 // pred_fallthru
    _
  // Predicated region
  $region26: #{generator_forward.1} parent=0 // pred_check
    _
  $region27: #{generator_forward.1} parent=0 // pred_check_branch
    %25 = sbr.rel (0) target = $region29
  $region28: #{generator_forward.1} parent=0 // pred_region
    _
  $region29: #{generator_forward.1} parent=0 // pred_fallthru
    _
  %v27 = vld [vmem:[%s0] sm:$0xff]
  %v28 = vlaneseq
  %v29 = vand.u32 %v28, 127
  %30 = vset.pattern.permute.xlu0 0
  %31 = vperm.xlu0 %30, %v27
  %v32 = vpop.permute.xlu0 %31
  %vm33 = vcmp.eq.s32.totalorder %v29, %v32
  %v34 = vsel %vm33, 1, 0
  %v35 = vcvt.s32.f32 %v34
  %v36 = vpack.c.bf16 %v35, %v35
  %v37 = vld [vmem:[%s2] sm:$0xf]
  %v38 = vld [vmem:[%s2 + $0x4] sm:$0xf]
  %v41 = vunpack.c.l.b16 %v37
  %v42 = vunpack.c.l.b16 %v38
  %v43 = vpack.c.b16 %v42, %v41
  %vm45 = vcmask 130048
  %v47 = vsel %vm45, %v36, 0
  %49 = vmatprep.subr.bf16.mxu0 0
  %50 = vmatpush1.bf16.msra.mxu0 %v43
  %51 = vmatprep.subr.bf16.mxu0 0
  %52 = vmatpush1.bf16.msra.mxu0 0
  %53 = vmatprep.subr.bf16.mxu0 0
  %54 = vmatpush1.bf16.msra.mxu0 0
  %55 = vmatprep.subr.bf16.mxu0 0
  %56 = vmatpush1.bf16.msra.mxu0 0
  %57 = vmatprep.subr.bf16.mxu0 0
  %58 = vmatpush1.bf16.msra.mxu0 0
  %59 = vmatprep.subr.bf16.mxu0 0
  %60 = vmatpush1.bf16.msra.mxu0 0
  %61 = vmatprep.subr.bf16.mxu0 0
  %62 = vmatpush1.bf16.msra.mxu0 0
  %63 = vmatprep.subr.bf16.mxu0 0
  %64 = vmatpush1.bf16.msra.mxu0 0
  %65 = vmatprep.subr.bf16.mxu0 0
  %66 = vmatpush1.bf16.msra.mxu0 0
  %67 = vmatprep.subr.bf16.mxu0 0
  %68 = vmatpush1.bf16.msra.mxu0 0
  %69 = vmatprep.subr.bf16.mxu0 0
  %70 = vmatpush1.bf16.msra.mxu0 0
  %71 = vmatprep.subr.bf16.mxu0 0
  %72 = vmatpush1.bf16.msra.mxu0 0
  %73 = vmatprep.subr.bf16.mxu0 0
  %74 = vmatpush1.bf16.msra.mxu0 0
  %75 = vmatprep.subr.bf16.mxu0 0
  %76 = vmatpush1.bf16.msra.mxu0 0
  %77 = vmatprep.subr.bf16.mxu0 0
  %78 = vmatpush1.bf16.msra.mxu0 0
  %79 = vmatprep.subr.bf16.mxu0 0
  %80 = vmatpush1.bf16.msra.mxu0 0
  %81 = vmatprep.mubr.bf16.mxu0 0
  %82 = vmatmul.mubr.bf16.gmra.mrb[0].mxu0 %v47
  %v83 = vpop.f32.mrb[0].mxu0
  %v84 = vadd.f32 0.0, %v83
  %v85 = vpop.f32.mrb[0].mxu0
  %v86 = vpop.f32.mrb[0].mxu0
  %v87 = vpop.f32.mrb[0].mxu0
  %88 = vdwg.mxu0
  %89 = vst [vmem:[#allocation2] sm:$0xff] 0.0
  %v90 = vld [vmem:[%s1] sm:$0xff]
  %v91 = vmul.f32 %v90, %v84
  %vm92 = vcmask 818176
  %93 = vst.msk [vmem:[#allocation2] sm:$0xff] %vm92, %v91
  %v94 = vld [vmem:[#allocation2] sm:$0xff]
  %v95 = vpack.c.bf16 %v94, %v94
  %v96 = vld [vmem:[%s3] sm:$0xf]
  %v97 = vld [vmem:[%s3 + $0x4] sm:$0xf]
  %v98 = vld [vmem:[%s3 + $0x8] sm:$0xf]
  %v99 = vld [vmem:[%s3 + $0xc] sm:$0xf]
  %v100 = vld [vmem:[%s3 + $0x10] sm:$0xf]
  %v101 = vld [vmem:[%s3 + $0x14] sm:$0xf]
  %v102 = vld [vmem:[%s3 + $0x18] sm:$0xf]
  %v103 = vld [vmem:[%s3 + $0x1c] sm:$0xf]
  %v104 = vld [vmem:[%s3 + $0x20] sm:$0xf]
  %v105 = vld [vmem:[%s3 + $0x24] sm:$0xf]
  %v106 = vld [vmem:[%s3 + $0x28] sm:$0xf]
  %v107 = vld [vmem:[%s3 + $0x2c] sm:$0xf]
  %v108 = vld [vmem:[%s3 + $0x30] sm:$0xf]
  %v109 = vld [vmem:[%s3 + $0x34] sm:$0xf]
  %v110 = vld [vmem:[%s3 + $0x38] sm:$0xf]
  %v111 = vld [vmem:[%s3 + $0x3c] sm:$0xf]
  %v112 = vld [vmem:[%s4] sm:$0x1]
  %v114 = vlaneseq
  %v115 = vshrl.u32 %v114, 7
  %v116 = vsub.s32 0, %v115
  %v117 = vrot.slane %v112, %v116
  %v135 = vunpack.c.l.b16 %v96
  %v136 = vunpack.c.l.b16 %v97
  %v137 = vunpack.c.l.b16 %v98
  %v138 = vunpack.c.l.b16 %v99
  %v139 = vunpack.c.l.b16 %v100
  %v140 = vunpack.c.l.b16 %v101
  %v141 = vunpack.c.l.b16 %v102
  %v142 = vunpack.c.l.b16 %v103
  %v143 = vunpack.c.l.b16 %v104
  %v144 = vunpack.c.l.b16 %v105
  %v145 = vunpack.c.l.b16 %v106
  %v146 = vunpack.c.l.b16 %v107
  %v147 = vunpack.c.l.b16 %v108
  %v148 = vunpack.c.l.b16 %v109
  %v149 = vunpack.c.l.b16 %v110
  %v150 = vunpack.c.l.b16 %v111
  %v151 = vpack.c.b16 %v136, %v135
  %v152 = vpack.c.b16 %v138, %v137
  %v153 = vpack.c.b16 %v140, %v139
  %v154 = vpack.c.b16 %v142, %v141
  %v155 = vpack.c.b16 %v144, %v143
  %v156 = vpack.c.b16 %v146, %v145
  %v157 = vpack.c.b16 %v148, %v147
  %v158 = vpack.c.b16 %v150, %v149
  %167 = vmatprep.subr.bf16.mxu0 0
  %168 = vmatpush1.bf16.msra.mxu0 %v151
  %169 = vmatprep.subr.bf16.mxu0 0
  %170 = vmatpush1.bf16.msra.mxu0 %v152
  %171 = vmatprep.subr.bf16.mxu0 0
  %172 = vmatpush1.bf16.msra.mxu0 %v153
  %173 = vmatprep.subr.bf16.mxu0 0
  %174 = vmatpush1.bf16.msra.mxu0 %v154
  %175 = vmatprep.subr.bf16.mxu0 0
  %176 = vmatpush1.bf16.msra.mxu0 %v155
  %177 = vmatprep.subr.bf16.mxu0 0
  %178 = vmatpush1.bf16.msra.mxu0 %v156
  %179 = vmatprep.subr.bf16.mxu0 0
  %180 = vmatpush1.bf16.msra.mxu0 %v157
  %181 = vmatprep.subr.bf16.mxu0 0
  %182 = vmatpush1.bf16.msra.mxu0 %v158
  %183 = vmatprep.subr.bf16.mxu0 0
  %184 = vmatpush1.bf16.msra.mxu0 0
  %185 = vmatprep.subr.bf16.mxu0 0
  %186 = vmatpush1.bf16.msra.mxu0 0
  %187 = vmatprep.subr.bf16.mxu0 0
  %188 = vmatpush1.bf16.msra.mxu0 0
  %189 = vmatprep.subr.bf16.mxu0 0
  %190 = vmatpush1.bf16.msra.mxu0 0
  %191 = vmatprep.subr.bf16.mxu0 0
  %192 = vmatpush1.bf16.msra.mxu0 0
  %193 = vmatprep.subr.bf16.mxu0 0
  %194 = vmatpush1.bf16.msra.mxu0 0
  %195 = vmatprep.subr.bf16.mxu0 0
  %196 = vmatpush1.bf16.msra.mxu0 0
  %197 = vmatprep.subr.bf16.mxu0 0
  %198 = vmatpush1.bf16.msra.mxu0 0
  %199 = vmatprep.mubr.bf16.mxu0 0
  %200 = vmatmul.mubr.bf16.gmra.mrb[0].mxu0 %v95
  %v201 = vpop.f32.mrb[0].mxu0
  %v202 = vadd.f32 %v117, %v201
  %v203 = vpop.f32.mrb[0].mxu0
  %v204 = vpop.f32.mrb[0].mxu0
  %v205 = vpop.f32.mrb[0].mxu0
  %206 = vdwg.mxu0
  %v207 = vmax.f32 %v202, 0.0
  %v208 = vpack.c.bf16 %v207, %v207
  %v209 = vld [vmem:[%s5] sm:$0xff]
  %v210 = vld [vmem:[%s5 + $0x8] sm:$0xff]
  %v211 = vld [vmem:[%s5 + $0x10] sm:$0xff]
  %v212 = vld [vmem:[%s5 + $0x18] sm:$0xf]
  %v213 = vld [vmem:[%s5 + $0x1c] sm:$0xff]
  %v214 = vld [vmem:[%s5 + $0x24] sm:$0xff]
  %v215 = vld [vmem:[%s5 + $0x2c] sm:$0xff]
  %v216 = vld [vmem:[%s5 + $0x34] sm:$0xf]
  %v217 = vld [vmem:[%s5 + $0x38] sm:$0xff]
  %v218 = vld [vmem:[%s5 + $0x40] sm:$0xff]
  %v219 = vld [vmem:[%s5 + $0x48] sm:$0xff]
  %v220 = vld [vmem:[%s5 + $0x50] sm:$0xf]
  %v221 = vld [vmem:[%s5 + $0x54] sm:$0xff]
  %v222 = vld [vmem:[%s5 + $0x5c] sm:$0xff]
  %v223 = vld [vmem:[%s5 + $0x64] sm:$0xff]
  %v224 = vld [vmem:[%s5 + $0x6c] sm:$0xf]
  %v225 = vld [vmem:[%s5 + $0x70] sm:$0xff]
  %v226 = vld [vmem:[%s5 + $0x78] sm:$0xff]
  %v227 = vld [vmem:[%s5 + $0x80] sm:$0xff]
  %v228 = vld [vmem:[%s5 + $0x88] sm:$0xf]
  %v229 = vld [vmem:[%s5 + $0x8c] sm:$0xff]
  %v230 = vld [vmem:[%s5 + $0x94] sm:$0xff]
  %v231 = vld [vmem:[%s5 + $0x9c] sm:$0xff]
  %v232 = vld [vmem:[%s5 + $0xa4] sm:$0xf]
  %v233 = vld [vmem:[%s5 + $0xa8] sm:$0xff]
  %v234 = vld [vmem:[%s5 + $0xb0] sm:$0xff]
  %v235 = vld [vmem:[%s5 + $0xb8] sm:$0xff]
  %v236 = vld [vmem:[%s5 + $0xc0] sm:$0xf]
  %v237 = vld [vmem:[%s5 + $0xc4] sm:$0xff]
  %v238 = vld [vmem:[%s5 + $0xcc] sm:$0xff]
  %v239 = vld [vmem:[%s5 + $0xd4] sm:$0xff]
  %v240 = vld [vmem:[%s5 + $0xdc] sm:$0xf]
  %v241 = vld [vmem:[%s5 + $0xe0] sm:$0xff]
  %v242 = vld [vmem:[%s5 + $0xe8] sm:$0xff]
  %v243 = vld [vmem:[%s5 + $0xf0] sm:$0xff]
  %v244 = vld [vmem:[%s5 + $0xf8] sm:$0xf]
  %v245 = vld [vmem:[%s5 + $0xfc] sm:$0xff]
  %v246 = vld [vmem:[%s5 + $0x104] sm:$0xff]
  %v247 = vld [vmem:[%s5 + $0x10c] sm:$0xff]
  %v248 = vld [vmem:[%s5 + $0x114] sm:$0xf]
  %v249 = vld [vmem:[%s5 + $0x118] sm:$0xff]
  %v250 = vld [vmem:[%s5 + $0x120] sm:$0xff]
  %v251 = vld [vmem:[%s5 + $0x128] sm:$0xff]
  %v252 = vld [vmem:[%s5 + $0x130] sm:$0xf]
  %v253 = vld [vmem:[%s5 + $0x134] sm:$0xff]
  %v254 = vld [vmem:[%s5 + $0x13c] sm:$0xff]
  %v255 = vld [vmem:[%s5 + $0x144] sm:$0xff]
  %v256 = vld [vmem:[%s5 + $0x14c] sm:$0xf]
  %v257 = vld [vmem:[%s5 + $0x150] sm:$0xff]
  %v258 = vld [vmem:[%s5 + $0x158] sm:$0xff]
  %v259 = vld [vmem:[%s5 + $0x160] sm:$0xff]
  %v260 = vld [vmem:[%s5 + $0x168] sm:$0xf]
  %v261 = vld [vmem:[%s5 + $0x16c] sm:$0xff]
  %v262 = vld [vmem:[%s5 + $0x174] sm:$0xff]
  %v263 = vld [vmem:[%s5 + $0x17c] sm:$0xff]
  %v264 = vld [vmem:[%s5 + $0x184] sm:$0xf]
  %v265 = vld [vmem:[%s5 + $0x188] sm:$0xff]
  %v266 = vld [vmem:[%s5 + $0x190] sm:$0xff]
  %v267 = vld [vmem:[%s5 + $0x198] sm:$0xff]
  %v268 = vld [vmem:[%s5 + $0x1a0] sm:$0xf]
  %v269 = vld [vmem:[%s5 + $0x1a4] sm:$0xff]
  %v270 = vld [vmem:[%s5 + $0x1ac] sm:$0xff]
  %v271 = vld [vmem:[%s5 + $0x1b4] sm:$0xff]
  %v272 = vld [vmem:[%s5 + $0x1bc] sm:$0xf]
  %v273 = vld [vmem:[%s6] sm:$0x7f]
  %v275 = vlaneseq
  %v276 = vshrl.u32 %v275, 7
  %v277 = vsub.s32 0, %v276
  %v278 = vrot.slane %v273, %v277
  %v279 = vlaneseq
  %v280 = vshrl.u32 %v279, 7
  %v281 = vsub.s32 1, %v280
  %v282 = vrot.slane %v273, %v281
  %v283 = vlaneseq
  %v284 = vshrl.u32 %v283, 7
  %v285 = vsub.s32 2, %v284
  %v286 = vrot.slane %v273, %v285
  %v287 = vlaneseq
  %v288 = vshrl.u32 %v287, 7
  %v289 = vsub.s32 3, %v288
  %v290 = vrot.slane %v273, %v289
  %v291 = vlaneseq
  %v292 = vshrl.u32 %v291, 7
  %v293 = vsub.s32 4, %v292
  %v294 = vrot.slane %v273, %v293
  %v295 = vlaneseq
  %v296 = vshrl.u32 %v295, 7
  %v297 = vsub.s32 5, %v296
  %v298 = vrot.slane %v273, %v297
  %v299 = vlaneseq
  %v300 = vshrl.u32 %v299, 7
  %v301 = vsub.s32 6, %v300
  %v302 = vrot.slane %v273, %v301
  %v374 = vunpack.c.l.b16 %v209
  %v375 = vunpack.c.h.b16 %v209
  %v376 = vunpack.c.l.b16 %v210
  %v377 = vunpack.c.h.b16 %v210
  %v378 = vunpack.c.l.b16 %v211
  %v379 = vunpack.c.h.b16 %v211
  %v380 = vunpack.c.l.b16 %v212
  %v381 = vunpack.c.l.b16 %v213
  %v382 = vunpack.c.h.b16 %v213
  %v383 = vunpack.c.l.b16 %v214
  %v384 = vunpack.c.h.b16 %v214
  %v385 = vunpack.c.l.b16 %v215
  %v386 = vunpack.c.h.b16 %v215
  %v387 = vunpack.c.l.b16 %v216
  %v388 = vunpack.c.l.b16 %v217
  %v389 = vunpack.c.h.b16 %v217
  %v390 = vunpack.c.l.b16 %v218
  %v391 = vunpack.c.h.b16 %v218
  %v392 = vunpack.c.l.b16 %v219
  %v393 = vunpack.c.h.b16 %v219
  %v394 = vunpack.c.l.b16 %v220
  %v395 = vunpack.c.l.b16 %v221
  %v396 = vunpack.c.h.b16 %v221
  %v397 = vunpack.c.l.b16 %v222
  %v398 = vunpack.c.h.b16 %v222
  %v399 = vunpack.c.l.b16 %v223
  %v400 = vunpack.c.h.b16 %v223
  %v401 = vunpack.c.l.b16 %v224
  %v402 = vunpack.c.l.b16 %v225
  %v403 = vunpack.c.h.b16 %v225
  %v404 = vunpack.c.l.b16 %v226
  %v405 = vunpack.c.h.b16 %v226
  %v406 = vunpack.c.l.b16 %v227
  %v407 = vunpack.c.h.b16 %v227
  %v408 = vunpack.c.l.b16 %v228
  %v409 = vunpack.c.l.b16 %v229
  %v410 = vunpack.c.h.b16 %v229
  %v411 = vunpack.c.l.b16 %v230
  %v412 = vunpack.c.h.b16 %v230
  %v413 = vunpack.c.l.b16 %v231
  %v414 = vunpack.c.h.b16 %v231
  %v415 = vunpack.c.l.b16 %v232
  %v416 = vunpack.c.l.b16 %v233
  %v417 = vunpack.c.h.b16 %v233
  %v418 = vunpack.c.l.b16 %v234
  %v419 = vunpack.c.h.b16 %v234
  %v420 = vunpack.c.l.b16 %v235
  %v421 = vunpack.c.h.b16 %v235
  %v422 = vunpack.c.l.b16 %v236
  %v423 = vunpack.c.l.b16 %v237
  %v424 = vunpack.c.h.b16 %v237
  %v425 = vunpack.c.l.b16 %v238
  %v426 = vunpack.c.h.b16 %v238
  %v427 = vunpack.c.l.b16 %v239
  %v428 = vunpack.c.h.b16 %v239
  %v429 = vunpack.c.l.b16 %v240
  %v430 = vunpack.c.l.b16 %v241
  %v431 = vunpack.c.h.b16 %v241
  %v432 = vunpack.c.l.b16 %v242
  %v433 = vunpack.c.h.b16 %v242
  %v434 = vunpack.c.l.b16 %v243
  %v435 = vunpack.c.h.b16 %v243
  %v436 = vunpack.c.l.b16 %v244
  %v437 = vunpack.c.l.b16 %v245
  %v438 = vunpack.c.h.b16 %v245
  %v439 = vunpack.c.l.b16 %v246
  %v440 = vunpack.c.h.b16 %v246
  %v441 = vunpack.c.l.b16 %v247
  %v442 = vunpack.c.h.b16 %v247
  %v443 = vunpack.c.l.b16 %v248
  %v444 = vunpack.c.l.b16 %v249
  %v445 = vunpack.c.h.b16 %v249
  %v446 = vunpack.c.l.b16 %v250
  %v447 = vunpack.c.h.b16 %v250
  %v448 = vunpack.c.l.b16 %v251
  %v449 = vunpack.c.h.b16 %v251
  %v450 = vunpack.c.l.b16 %v252
  %v451 = vunpack.c.l.b16 %v253
  %v452 = vunpack.c.h.b16 %v253
  %v453 = vunpack.c.l.b16 %v254
  %v454 = vunpack.c.h.b16 %v254
  %v455 = vunpack.c.l.b16 %v255
  %v456 = vunpack.c.h.b16 %v255
  %v457 = vunpack.c.l.b16 %v256
  %v458 = vunpack.c.l.b16 %v257
  %v459 = vunpack.c.h.b16 %v257
  %v460 = vunpack.c.l.b16 %v258
  %v461 = vunpack.c.h.b16 %v258
  %v462 = vunpack.c.l.b16 %v259
  %v463 = vunpack.c.h.b16 %v259
  %v464 = vunpack.c.l.b16 %v260
  %v465 = vunpack.c.l.b16 %v261
  %v466 = vunpack.c.h.b16 %v261
  %v467 = vunpack.c.l.b16 %v262
  %v468 = vunpack.c.h.b16 %v262
  %v469 = vunpack.c.l.b16 %v263
  %v470 = vunpack.c.h.b16 %v263
  %v471 = vunpack.c.l.b16 %v264
  %v472 = vunpack.c.l.b16 %v265
  %v473 = vunpack.c.h.b16 %v265
  %v474 = vunpack.c.l.b16 %v266
  %v475 = vunpack.c.h.b16 %v266
  %v476 = vunpack.c.l.b16 %v267
  %v477 = vunpack.c.h.b16 %v267
  %v478 = vunpack.c.l.b16 %v268
  %v479 = vunpack.c.l.b16 %v269
  %v480 = vunpack.c.h.b16 %v269
  %v481 = vunpack.c.l.b16 %v270
  %v482 = vunpack.c.h.b16 %v270
  %v483 = vunpack.c.l.b16 %v271
  %v484 = vunpack.c.h.b16 %v271
  %v485 = vunpack.c.l.b16 %v272
  %v486 = vpack.c.b16 %v381, %v374
  %v487 = vpack.c.b16 %v382, %v375
  %v488 = vpack.c.b16 %v383, %v376
  %v489 = vpack.c.b16 %v384, %v377
  %v490 = vpack.c.b16 %v385, %v378
  %v491 = vpack.c.b16 %v386, %v379
  %v492 = vpack.c.b16 %v387, %v380
  %v493 = vpack.c.b16 %v395, %v388
  %v494 = vpack.c.b16 %v396, %v389
  %v495 = vpack.c.b16 %v397, %v390
  %v496 = vpack.c.b16 %v398, %v391
  %v497 = vpack.c.b16 %v399, %v392
  %v498 = vpack.c.b16 %v400, %v393
  %v499 = vpack.c.b16 %v401, %v394
  %v500 = vpack.c.b16 %v409, %v402
  %v501 = vpack.c.b16 %v410, %v403
  %v502 = vpack.c.b16 %v411, %v404
  %v503 = vpack.c.b16 %v412, %v405
  %v504 = vpack.c.b16 %v413, %v406
  %v505 = vpack.c.b16 %v414, %v407
  %v506 = vpack.c.b16 %v415, %v408
  %v507 = vpack.c.b16 %v423, %v416
  %v508 = vpack.c.b16 %v424, %v417
  %v509 = vpack.c.b16 %v425, %v418
  %v510 = vpack.c.b16 %v426, %v419
  %v511 = vpack.c.b16 %v427, %v420
  %v512 = vpack.c.b16 %v428, %v421
  %v513 = vpack.c.b16 %v429, %v422
  %v514 = vpack.c.b16 %v437, %v430
  %v515 = vpack.c.b16 %v438, %v431
  %v516 = vpack.c.b16 %v439, %v432
  %v517 = vpack.c.b16 %v440, %v433
  %v518 = vpack.c.b16 %v441, %v434
  %v519 = vpack.c.b16 %v442, %v435
  %v520 = vpack.c.b16 %v443, %v436
  %v521 = vpack.c.b16 %v451, %v444
  %v522 = vpack.c.b16 %v452, %v445
  %v523 = vpack.c.b16 %v453, %v446
  %v524 = vpack.c.b16 %v454, %v447
  %v525 = vpack.c.b16 %v455, %v448
  %v526 = vpack.c.b16 %v456, %v449
  %v527 = vpack.c.b16 %v457, %v450
  %v528 = vpack.c.b16 %v465, %v458
  %v529 = vpack.c.b16 %v466, %v459
  %v530 = vpack.c.b16 %v467, %v460
  %v531 = vpack.c.b16 %v468, %v461
  %v532 = vpack.c.b16 %v469, %v462
  %v533 = vpack.c.b16 %v470, %v463
  %v534 = vpack.c.b16 %v471, %v464
  %v535 = vpack.c.b16 %v479, %v472
  %v536 = vpack.c.b16 %v480, %v473
  %v537 = vpack.c.b16 %v481, %v474
  %v538 = vpack.c.b16 %v482, %v475
  %v539 = vpack.c.b16 %v483, %v476
  %v540 = vpack.c.b16 %v484, %v477
  %v541 = vpack.c.b16 %v485, %v478
  %598 = vmatprep.subr.bf16.mxu0 %v487
  %599 = vmatpush1.bf16.msra.mxu0 %v486
  %600 = vmatprep.subr.bf16.mxu0 %v494
  %601 = vmatpush1.bf16.msra.mxu0 %v493
  %602 = vmatprep.subr.bf16.mxu0 %v501
  %603 = vmatpush1.bf16.msra.mxu0 %v500
  %604 = vmatprep.subr.bf16.mxu0 %v508
  %605 = vmatpush1.bf16.msra.mxu0 %v507
  %606 = vmatprep.subr.bf16.mxu0 %v515
  %607 = vmatpush1.bf16.msra.mxu0 %v514
  %608 = vmatprep.subr.bf16.mxu0 %v522
  %609 = vmatpush1.bf16.msra.mxu0 %v521
  %610 = vmatprep.subr.bf16.mxu0 %v529
  %611 = vmatpush1.bf16.msra.mxu0 %v528
  %612 = vmatprep.subr.bf16.mxu0 %v536
  %613 = vmatpush1.bf16.msra.mxu0 %v535
  %614 = vmatprep.subr.bf16.mxu0 0
  %615 = vmatpush1.bf16.msra.mxu0 0
  %616 = vmatprep.subr.bf16.mxu0 0
  %617 = vmatpush1.bf16.msra.mxu0 0
  %618 = vmatprep.subr.bf16.mxu0 0
  %619 = vmatpush1.bf16.msra.mxu0 0
  %620 = vmatprep.subr.bf16.mxu0 0
  %621 = vmatpush1.bf16.msra.mxu0 0
  %622 = vmatprep.subr.bf16.mxu0 0
  %623 = vmatpush1.bf16.msra.mxu0 0
  %624 = vmatprep.subr.bf16.mxu0 0
  %625 = vmatpush1.bf16.msra.mxu0 0
  %626 = vmatprep.subr.bf16.mxu0 0
  %627 = vmatpush1.bf16.msra.mxu0 0
  %628 = vmatprep.subr.bf16.mxu0 0
  %629 = vmatpush1.bf16.msra.mxu0 0
  %630 = vmatprep.mubr.bf16.mxu0 0
  %631 = vmatmul.mubr.bf16.gmra.mrb[0].mxu0 %v208
  %v632 = vpop.f32.mrb[0].mxu0
  %v633 = vadd.f32 %v278, %v632
  %v634 = vpop.f32.mrb[0].mxu0
  %v635 = vadd.f32 %v282, %v634
  %v636 = vpop.f32.mrb[0].mxu0
  %v637 = vpop.f32.mrb[0].mxu0
  %638 = vdwg.mxu0
  %639 = vmatprep.subr.bf16.mxu0 %v489
  %640 = vmatpush1.bf16.msra.mxu0 %v488
  %641 = vmatprep.subr.bf16.mxu0 %v496
  %642 = vmatpush1.bf16.msra.mxu0 %v495
  %643 = vmatprep.subr.bf16.mxu0 %v503
  %644 = vmatpush1.bf16.msra.mxu0 %v502
  %645 = vmatprep.subr.bf16.mxu0 %v510
  %646 = vmatpush1.bf16.msra.mxu0 %v509
  %647 = vmatprep.subr.bf16.mxu0 %v517
  %648 = vmatpush1.bf16.msra.mxu0 %v516
  %649 = vmatprep.subr.bf16.mxu0 %v524
  %650 = vmatpush1.bf16.msra.mxu0 %v523
  %651 = vmatprep.subr.bf16.mxu0 %v531
  %652 = vmatpush1.bf16.msra.mxu0 %v530
  %653 = vmatprep.subr.bf16.mxu0 %v538
  %654 = vmatpush1.bf16.msra.mxu0 %v537
  %655 = vmatprep.subr.bf16.mxu0 0
  %656 = vmatpush1.bf16.msra.mxu0 0
  %657 = vmatprep.subr.bf16.mxu0 0
  %658 = vmatpush1.bf16.msra.mxu0 0
  %659 = vmatprep.subr.bf16.mxu0 0
  %660 = vmatpush1.bf16.msra.mxu0 0
  %661 = vmatprep.subr.bf16.mxu0 0
  %662 = vmatpush1.bf16.msra.mxu0 0
  %663 = vmatprep.subr.bf16.mxu0 0
  %664 = vmatpush1.bf16.msra.mxu0 0
  %665 = vmatprep.subr.bf16.mxu0 0
  %666 = vmatpush1.bf16.msra.mxu0 0
  %667 = vmatprep.subr.bf16.mxu0 0
  %668 = vmatpush1.bf16.msra.mxu0 0
  %669 = vmatprep.subr.bf16.mxu0 0
  %670 = vmatpush1.bf16.msra.mxu0 0
  %671 = vmatprep.mubr.bf16.mxu0 0
  %672 = vmatmul.mubr.bf16.gmra.mrb[0].mxu0 %v208
  %v673 = vpop.f32.mrb[0].mxu0
  %v674 = vadd.f32 %v286, %v673
  %v675 = vpop.f32.mrb[0].mxu0
  %v676 = vadd.f32 %v290, %v675
  %v677 = vpop.f32.mrb[0].mxu0
  %v678 = vpop.f32.mrb[0].mxu0
  %679 = vdwg.mxu0
  %680 = vmatprep.subr.bf16.mxu0 %v491
  %681 = vmatpush1.bf16.msra.mxu0 %v490
  %682 = vmatprep.subr.bf16.mxu0 %v498
  %683 = vmatpush1.bf16.msra.mxu0 %v497
  %684 = vmatprep.subr.bf16.mxu0 %v505
  %685 = vmatpush1.bf16.msra.mxu0 %v504
  %686 = vmatprep.subr.bf16.mxu0 %v512
  %687 = vmatpush1.bf16.msra.mxu0 %v511
  %688 = vmatprep.subr.bf16.mxu0 %v519
  %689 = vmatpush1.bf16.msra.mxu0 %v518
  %690 = vmatprep.subr.bf16.mxu0 %v526
  %691 = vmatpush1.bf16.msra.mxu0 %v525
  %692 = vmatprep.subr.bf16.mxu0 %v533
  %693 = vmatpush1.bf16.msra.mxu0 %v532
  %694 = vmatprep.subr.bf16.mxu0 %v540
  %695 = vmatpush1.bf16.msra.mxu0 %v539
  %696 = vmatprep.subr.bf16.mxu0 0
  %697 = vmatpush1.bf16.msra.mxu0 0
  %698 = vmatprep.subr.bf16.mxu0 0
  %699 = vmatpush1.bf16.msra.mxu0 0
  %700 = vmatprep.subr.bf16.mxu0 0
  %701 = vmatpush1.bf16.msra.mxu0 0
  %702 = vmatprep.subr.bf16.mxu0 0
  %703 = vmatpush1.bf16.msra.mxu0 0
  %704 = vmatprep.subr.bf16.mxu0 0
  %705 = vmatpush1.bf16.msra.mxu0 0
  %706 = vmatprep.subr.bf16.mxu0 0
  %707 = vmatpush1.bf16.msra.mxu0 0
  %708 = vmatprep.subr.bf16.mxu0 0
  %709 = vmatpush1.bf16.msra.mxu0 0
  %710 = vmatprep.subr.bf16.mxu0 0
  %711 = vmatpush1.bf16.msra.mxu0 0
  %712 = vmatprep.mubr.bf16.mxu0 0
  %713 = vmatmul.mubr.bf16.gmra.mrb[0].mxu0 %v208
  %v714 = vpop.f32.mrb[0].mxu0
  %v715 = vadd.f32 %v294, %v714
  %v716 = vpop.f32.mrb[0].mxu0
  %v717 = vadd.f32 %v298, %v716
  %v718 = vpop.f32.mrb[0].mxu0
  %v719 = vpop.f32.mrb[0].mxu0
  %720 = vdwg.mxu0
  %721 = vmatprep.subr.bf16.mxu0 0
  %722 = vmatpush1.bf16.msra.mxu0 %v492
  %723 = vmatprep.subr.bf16.mxu0 0
  %724 = vmatpush1.bf16.msra.mxu0 %v499
  %725 = vmatprep.subr.bf16.mxu0 0
  %726 = vmatpush1.bf16.msra.mxu0 %v506
  %727 = vmatprep.subr.bf16.mxu0 0
  %728 = vmatpush1.bf16.msra.mxu0 %v513
  %729 = vmatprep.subr.bf16.mxu0 0
  %730 = vmatpush1.bf16.msra.mxu0 %v520
  %731 = vmatprep.subr.bf16.mxu0 0
  %732 = vmatpush1.bf16.msra.mxu0 %v527
  %733 = vmatprep.subr.bf16.mxu0 0
  %734 = vmatpush1.bf16.msra.mxu0 %v534
  %735 = vmatprep.subr.bf16.mxu0 0
  %736 = vmatpush1.bf16.msra.mxu0 %v541
  %737 = vmatprep.subr.bf16.mxu0 0
  %738 = vmatpush1.bf16.msra.mxu0 0
  %739 = vmatprep.subr.bf16.mxu0 0
  %740 = vmatpush1.bf16.msra.mxu0 0
  %741 = vmatprep.subr.bf16.mxu0 0
  %742 = vmatpush1.bf16.msra.mxu0 0
  %743 = vmatprep.subr.bf16.mxu0 0
  %744 = vmatpush1.bf16.msra.mxu0 0
  %745 = vmatprep.subr.bf16.mxu0 0
  %746 = vmatpush1.bf16.msra.mxu0 0
  %747 = vmatprep.subr.bf16.mxu0 0
  %748 = vmatpush1.bf16.msra.mxu0 0
  %749 = vmatprep.subr.bf16.mxu0 0
  %750 = vmatpush1.bf16.msra.mxu0 0
  %751 = vmatprep.subr.bf16.mxu0 0
  %752 = vmatpush1.bf16.msra.mxu0 0
  %753 = vmatprep.mubr.bf16.mxu0 0
  %754 = vmatmul.mubr.bf16.gmra.mrb[0].mxu0 %v208
  %v755 = vpop.f32.mrb[0].mxu0
  %v756 = vadd.f32 %v302, %v755
  %v757 = vpop.f32.mrb[0].mxu0
  %v758 = vpop.f32.mrb[0].mxu0
  %v759 = vpop.f32.mrb[0].mxu0
  %760 = vdwg.mxu0
  %v761 = vtanh.pop %v633
  %v762 = vtanh.pop %v635
  %v763 = vtanh.pop %v674
  %v764 = vtanh.pop %v676
  %v765 = vtanh.pop %v715
  %v766 = vtanh.pop %v717
  %v767 = vtanh.pop %v756
  %768 = vst [vmem:[%s7] sm:$0xff] %v761
  %769 = vst [vmem:[%s7 + $0x8] sm:$0xff] %v762
  %770 = vst [vmem:[%s7 + $0x10] sm:$0xff] %v763
  %771 = vst [vmem:[%s7 + $0x18] sm:$0xff] %v764
  %772 = vst [vmem:[%s7 + $0x20] sm:$0xff] %v765
  %773 = vst [vmem:[%s7 + $0x28] sm:$0xff] %v766
  %774 = vst.msk [vmem:[%s7 + $0x30] sm:$0xff] %vm45, %v767
  // Predicated region
  $region30: #{generator_forward.1} parent=0 // pred_check
    _
  $region31: #{generator_forward.1} parent=0 // pred_check_branch
    %776 = sbr.rel (0) target = $region33
  $region32: #{generator_forward.1} parent=0 // pred_region
    _
  $region33: #{generator_forward.1} parent=0 // pred_fallthru
    _
  // Predicated region
  $region34: #{generator_forward.1} parent=0 // pred_check
    _
  $region35: #{generator_forward.1} parent=0 // pred_check_branch
    %778 = sbr.rel (0) target = $region37
  $region36: #{generator_forward.1} parent=0 // pred_region
    _
  $region37: #{generator_forward.1} parent=0 // pred_fallthru
    _

</llo_original>
